<compile_context>
chip_gen: v7x
topology: tpu7x:2x2x1
jax: 0.10.0
libtpu: 0.0.40
codegen_flags: <defaults>
</compile_context>

<pallas_src>
import jax
import jax.numpy as jnp
from jax.experimental import pallas as pl
from jax.experimental.pallas import tpu as pltpu

# ---- model config (small, consistent with the module) ----
BATCH = 2
SEQ = 8
HIDDEN = 32
NUM_HEADS = 4
HEAD_DIM = HIDDEN // NUM_HEADS
LAYER_NORM_EPS = 1e-12


def bert_attention_kernel(x_ref, wqkv_ref, wo_ref, slab_ref, out_ref):
    n_tok, hidden = x_ref.shape          # (B*S, H) = (16, 32)
    x = x_ref[...]
    slab = slab_ref[...]                 # (n_tok + 4, 3H)

    # Unpack the fused small-parameter slab (all slices are static).
    attn_bias = slab[:n_tok, :n_tok]                      # (16,16) 0 / -1e30 block-diag
    bqkv = slab[n_tok:n_tok + 1, :]                       # (1, 3H)  (bq*scale | bk | bv)
    bo = slab[n_tok + 1:n_tok + 2, :hidden]               # (1, H)
    gamma = slab[n_tok + 2:n_tok + 3, :hidden]            # (1, H)
    beta = slab[n_tok + 3:n_tok + 4, :hidden]             # (1, H)

    # Fused Q/K/V projection: one (B*S, H) @ (H, 3H) MXU matmul.
    # 1/sqrt(head_dim) is already folded into the Q columns of wqkv / bqkv.
    qkv = jnp.dot(x, wqkv_ref[...], preferred_element_type=jnp.float32) + bqkv
    q = qkv[:, 0 * hidden:1 * hidden]
    k = qkv[:, 1 * hidden:2 * hidden]
    v = qkv[:, 2 * hidden:3 * hidden]

    # Stack heads on a leading batch dim: (NUM_HEADS, n_tok, HEAD_DIM).
    qh = jnp.stack([q[:, h * HEAD_DIM:(h + 1) * HEAD_DIM] for h in range(NUM_HEADS)], axis=0)
    kh = jnp.stack([k[:, h * HEAD_DIM:(h + 1) * HEAD_DIM] for h in range(NUM_HEADS)], axis=0)
    vh = jnp.stack([v[:, h * HEAD_DIM:(h + 1) * HEAD_DIM] for h in range(NUM_HEADS)], axis=0)

    # Head-batched scores + batch-isolation additive bias + softmax.
    s = jnp.einsum("hqd,hkd->hqk", qh, kh, preferred_element_type=jnp.float32)  # (4,16,16)
    s = s + attn_bias[None, :, :]
    s = s - jnp.max(s, axis=-1, keepdims=True)
    p = jnp.exp(s)
    p = p * pl.reciprocal(jnp.sum(p, axis=-1, keepdims=True))   # exact (not approx)

    # Head-batched context, then ONE output projection matmul.
    ctx = jnp.einsum("hqk,hkd->hqd", p, vh, preferred_element_type=jnp.float32)  # (4,16,8)
    ctx_flat = jnp.concatenate([ctx[h] for h in range(NUM_HEADS)], axis=-1)      # (16,32)
    y = jnp.dot(ctx_flat, wo_ref[...], preferred_element_type=jnp.float32) + bo + x

    # BertSelfOutput LayerNorm (dropout is identity in eval mode).
    mu = jnp.mean(y, axis=-1, keepdims=True)
    var = jnp.mean((y - mu) ** 2, axis=-1, keepdims=True)
    out_ref[...] = (y - mu) * jax.lax.rsqrt(var + LAYER_NORM_EPS) * gamma + beta


def prepare_params(p, batch=BATCH, seq=SEQ):
    """One-time parameter fusion (layout plumbing kept off the per-call path)."""
    scale = 1.0 / (HEAD_DIM ** 0.5)
    wqkv = jnp.concatenate([p["wq"] * scale, p["wk"], p["wv"]], axis=1)   # (H, 3H)
    bqkv = jnp.concatenate([p["bq"] * scale, p["bk"], p["bv"]], axis=1)   # (1, 3H)

    n_tok = batch * seq
    # Block-diagonal batch-isolation bias: 0 within a batch element, -1e30 across.
    # Safe because every row always has >= 1 unmasked (same-batch) entry.
    row_b = jnp.arange(n_tok)[:, None] // seq
    col_b = jnp.arange(n_tok)[None, :] // seq
    attn_bias = jnp.where(row_b == col_b, 0.0, -1e30).astype(jnp.float32)  # (n_tok, n_tok)

    slab = jnp.zeros((n_tok + 4, 3 * HIDDEN), jnp.float32)
    slab = slab.at[:n_tok, :n_tok].set(attn_bias)
    slab = slab.at[n_tok, :].set(bqkv[0])
    slab = slab.at[n_tok + 1, :HIDDEN].set(p["bo"][0])
    slab = slab.at[n_tok + 2, :HIDDEN].set(p["gamma"][0])
    slab = slab.at[n_tok + 3, :HIDDEN].set(p["beta"][0])

    return {"wqkv": wqkv, "wo": p["wo"], "slab": slab}


@jax.jit
def bert_attention(x, fused):
    B, S, H = x.shape
    BS = B * S
    x2 = x.reshape(BS, H)

    out2 = pl.pallas_call(
        bert_attention_kernel,
        out_shape=jax.ShapeDtypeStruct((BS, H), jnp.float32),
        in_specs=[
            pl.BlockSpec(memory_space=pltpu.MemorySpace.VMEM),   # tokens (B*S, H)
            pl.BlockSpec(memory_space=pltpu.MemorySpace.VMEM),   # fused Wq|Wk|Wv
            pl.BlockSpec(memory_space=pltpu.MemorySpace.VMEM),   # output dense W
            pl.BlockSpec(memory_space=pltpu.MemorySpace.VMEM),   # fused small-param slab
        ],
        out_specs=pl.BlockSpec(memory_space=pltpu.MemorySpace.VMEM),
    )(x2, fused["wqkv"], fused["wo"], fused["slab"])
    return out2.reshape(B, S, H)


def reference(x, p):
    """Pure-JAX reference mirroring the PyTorch module (eval mode)."""
    B, S, H = x.shape
    q = x @ p["wq"] + p["bq"][0]
    k = x @ p["wk"] + p["bk"][0]
    v = x @ p["wv"] + p["bv"][0]

    def split(t):  # (B,S,H) -> (B, nh, S, d)
        return t.reshape(B, S, NUM_HEADS, HEAD_DIM).transpose(0, 2, 1, 3)

    qh, kh, vh = split(q), split(k), split(v)
    scores = jnp.einsum("bhqd,bhkd->bhqk", qh, kh) / jnp.sqrt(jnp.float32(HEAD_DIM))
    probs = jax.nn.softmax(scores, axis=-1)
    ctx = jnp.einsum("bhqk,bhkd->bhqd", probs, vh)
    ctx = ctx.transpose(0, 2, 1, 3).reshape(B, S, H)

    y = ctx @ p["wo"] + p["bo"][0] + x
    mu = jnp.mean(y, axis=-1, keepdims=True)
    var = jnp.mean((y - mu) ** 2, axis=-1, keepdims=True)
    return (y - mu) / jnp.sqrt(var + LAYER_NORM_EPS) * p["gamma"][0] + p["beta"][0]


def init_params(key):
    keys = jax.random.split(key, 8)
    s = 0.02
    return {
        "wq": s * jax.random.normal(keys[0], (HIDDEN, HIDDEN), jnp.float32),
        "bq": s * jax.random.normal(keys[1], (1, HIDDEN), jnp.float32),
        "wk": s * jax.random.normal(keys[2], (HIDDEN, HIDDEN), jnp.float32),
        "bk": s * jax.random.normal(keys[3], (1, HIDDEN), jnp.float32),
        "wv": s * jax.random.normal(keys[4], (HIDDEN, HIDDEN), jnp.float32),
        "bv": s * jax.random.normal(keys[5], (1, HIDDEN), jnp.float32),
        "wo": s * jax.random.normal(keys[6], (HIDDEN, HIDDEN), jnp.float32),
        "bo": s * jax.random.normal(keys[7], (1, HIDDEN), jnp.float32),
        "gamma": jnp.ones((1, HIDDEN), jnp.float32),
        "beta": jnp.zeros((1, HIDDEN), jnp.float32),
    }


if __name__ == "__main__":
    key = jax.random.PRNGKey(0)
    kp, kx = jax.random.split(key)
    params = init_params(kp)
    x = jax.random.normal(kx, (BATCH, SEQ, HIDDEN), jnp.float32)

    fused = prepare_params(params)                 # one-time parameter fusion
    fused = jax.block_until_ready(fused)

    out = bert_attention(x, fused)
    out = jax.block_until_ready(out)

    ref = reference(x, params)
    assert out.shape == (BATCH, SEQ, HIDDEN)
    err = float(jnp.max(jnp.abs(out - ref)))
    assert err < 1e-4, f"mismatch vs JAX reference: {err}"

    print("KERNEL_OK")
</pallas_src>

<mosaic_0001>
module attributes {stable_mosaic.version = 11 : i64} {
  func.func @bert_attention_kernel(%arg0: memref<16x32xf32, #tpu.memory_space<vmem>>, %arg1: memref<32x96xf32, #tpu.memory_space<vmem>>, %arg2: memref<32x32xf32, #tpu.memory_space<vmem>>, %arg3: memref<20x96xf32, #tpu.memory_space<vmem>>, %arg4: memref<16x32xf32, #tpu.memory_space<vmem>>) attributes {dimension_semantics = [], scalar_prefetch = 0 : i64, scratch_operands = 0 : i64, tpu.core_type = #tpu.core_type<tc>} {
    %c0 = arith.constant 0 : index
    %c0_0 = arith.constant 0 : index
    %0 = vector.load %arg0[%c0, %c0_0] : memref<16x32xf32, #tpu.memory_space<vmem>>, vector<16x32xf32>
    %c0_1 = arith.constant 0 : index
    %c0_2 = arith.constant 0 : index
    %1 = vector.load %arg3[%c0_1, %c0_2] : memref<20x96xf32, #tpu.memory_space<vmem>>, vector<20x96xf32>
    %2 = vector.extract_strided_slice %1 {offsets = [0, 0], sizes = [16, 16], strides = [1, 1]} : vector<20x96xf32> to vector<16x16xf32>
    %3 = vector.extract_strided_slice %1 {offsets = [16, 0], sizes = [1, 96], strides = [1, 1]} : vector<20x96xf32> to vector<1x96xf32>
    %4 = vector.extract_strided_slice %1 {offsets = [17, 0], sizes = [1, 32], strides = [1, 1]} : vector<20x96xf32> to vector<1x32xf32>
    %5 = vector.extract_strided_slice %1 {offsets = [18, 0], sizes = [1, 32], strides = [1, 1]} : vector<20x96xf32> to vector<1x32xf32>
    %6 = vector.extract_strided_slice %1 {offsets = [19, 0], sizes = [1, 32], strides = [1, 1]} : vector<20x96xf32> to vector<1x32xf32>
    %c0_3 = arith.constant 0 : index
    %c0_4 = arith.constant 0 : index
    %7 = vector.load %arg1[%c0_3, %c0_4] : memref<32x96xf32, #tpu.memory_space<vmem>>, vector<32x96xf32>
    %cst = arith.constant dense<0.000000e+00> : vector<16x96xf32>
    %8 = tpu.matmul %0, %7, %cst {dimension_numbers = #tpu.dot_dimension_numbers<[1], [0], [0], [1], [0, 0, 1, 1], [], []>} : vector<16x32xf32>, vector<32x96xf32>, vector<16x96xf32> -> vector<16x96xf32>
    %9 = vector.broadcast %3 : vector<1x96xf32> to vector<16x96xf32>
    %10 = arith.addf %8, %9 : vector<16x96xf32>
    %11 = vector.extract_strided_slice %10 {offsets = [0, 0], sizes = [16, 32], strides = [1, 1]} : vector<16x96xf32> to vector<16x32xf32>
    %12 = vector.extract_strided_slice %10 {offsets = [0, 32], sizes = [16, 32], strides = [1, 1]} : vector<16x96xf32> to vector<16x32xf32>
    %13 = vector.extract_strided_slice %10 {offsets = [0, 64], sizes = [16, 32], strides = [1, 1]} : vector<16x96xf32> to vector<16x32xf32>
    %14 = vector.extract_strided_slice %11 {offsets = [0, 0], sizes = [16, 8], strides = [1, 1]} : vector<16x32xf32> to vector<16x8xf32>
    %15 = vector.extract_strided_slice %11 {offsets = [0, 8], sizes = [16, 8], strides = [1, 1]} : vector<16x32xf32> to vector<16x8xf32>
    %16 = vector.extract_strided_slice %11 {offsets = [0, 16], sizes = [16, 8], strides = [1, 1]} : vector<16x32xf32> to vector<16x8xf32>
    %17 = vector.extract_strided_slice %11 {offsets = [0, 24], sizes = [16, 8], strides = [1, 1]} : vector<16x32xf32> to vector<16x8xf32>
    %18 = vector.shape_cast %14 : vector<16x8xf32> to vector<1x16x8xf32>
    %19 = vector.shape_cast %15 : vector<16x8xf32> to vector<1x16x8xf32>
    %20 = vector.shape_cast %16 : vector<16x8xf32> to vector<1x16x8xf32>
    %21 = vector.shape_cast %17 : vector<16x8xf32> to vector<1x16x8xf32>
    %22 = tpu.concatenate %18, %19, %20, %21 in 0 : vector<1x16x8xf32>, vector<1x16x8xf32>, vector<1x16x8xf32>, vector<1x16x8xf32> -> vector<4x16x8xf32>
    %23 = vector.extract_strided_slice %12 {offsets = [0, 0], sizes = [16, 8], strides = [1, 1]} : vector<16x32xf32> to vector<16x8xf32>
    %24 = vector.extract_strided_slice %12 {offsets = [0, 8], sizes = [16, 8], strides = [1, 1]} : vector<16x32xf32> to vector<16x8xf32>
    %25 = vector.extract_strided_slice %12 {offsets = [0, 16], sizes = [16, 8], strides = [1, 1]} : vector<16x32xf32> to vector<16x8xf32>
    %26 = vector.extract_strided_slice %12 {offsets = [0, 24], sizes = [16, 8], strides = [1, 1]} : vector<16x32xf32> to vector<16x8xf32>
    %27 = vector.shape_cast %23 : vector<16x8xf32> to vector<1x16x8xf32>
    %28 = vector.shape_cast %24 : vector<16x8xf32> to vector<1x16x8xf32>
    %29 = vector.shape_cast %25 : vector<16x8xf32> to vector<1x16x8xf32>
    %30 = vector.shape_cast %26 : vector<16x8xf32> to vector<1x16x8xf32>
    %31 = tpu.concatenate %27, %28, %29, %30 in 0 : vector<1x16x8xf32>, vector<1x16x8xf32>, vector<1x16x8xf32>, vector<1x16x8xf32> -> vector<4x16x8xf32>
    %32 = vector.extract_strided_slice %13 {offsets = [0, 0], sizes = [16, 8], strides = [1, 1]} : vector<16x32xf32> to vector<16x8xf32>
    %33 = vector.extract_strided_slice %13 {offsets = [0, 8], sizes = [16, 8], strides = [1, 1]} : vector<16x32xf32> to vector<16x8xf32>
    %34 = vector.extract_strided_slice %13 {offsets = [0, 16], sizes = [16, 8], strides = [1, 1]} : vector<16x32xf32> to vector<16x8xf32>
    %35 = vector.extract_strided_slice %13 {offsets = [0, 24], sizes = [16, 8], strides = [1, 1]} : vector<16x32xf32> to vector<16x8xf32>
    %36 = vector.shape_cast %32 : vector<16x8xf32> to vector<1x16x8xf32>
    %37 = vector.shape_cast %33 : vector<16x8xf32> to vector<1x16x8xf32>
    %38 = vector.shape_cast %34 : vector<16x8xf32> to vector<1x16x8xf32>
    %39 = vector.shape_cast %35 : vector<16x8xf32> to vector<1x16x8xf32>
    %40 = tpu.concatenate %36, %37, %38, %39 in 0 : vector<1x16x8xf32>, vector<1x16x8xf32>, vector<1x16x8xf32>, vector<1x16x8xf32> -> vector<4x16x8xf32>
    "tpu.trace_start"() <{level = 10 : i32, message = "hqd,hkd->hqk"}> : () -> ()
    %cst_5 = arith.constant dense<0.000000e+00> : vector<4x16x16xf32>
    %41 = tpu.matmul %22, %31, %cst_5 {dimension_numbers = #tpu.dot_dimension_numbers<[2], [2], [1], [1], [0, 0, 0, 1, 1, 1], [0], [0]>} : vector<4x16x8xf32>, vector<4x16x8xf32>, vector<4x16x16xf32> -> vector<4x16x16xf32>
    "tpu.trace_stop"() : () -> ()
    %42 = vector.shape_cast %2 : vector<16x16xf32> to vector<1x16x16xf32>
    %43 = vector.broadcast %42 : vector<1x16x16xf32> to vector<4x16x16xf32>
    %44 = arith.addf %41, %43 : vector<4x16x16xf32>
    %cst_6 = arith.constant dense<0xFF800000> : vector<4x16xf32>
    %45 = vector.multi_reduction <maximumf>, %44, %cst_6 [2] : vector<4x16x16xf32> to vector<4x16xf32>
    %46 = vector.shape_cast %45 : vector<4x16xf32> to vector<4x16x1xf32>
    %47 = vector.broadcast %46 : vector<4x16x1xf32> to vector<4x16x16xf32>
    %48 = arith.subf %44, %47 : vector<4x16x16xf32>
    %49 = math.exp %48 : vector<4x16x16xf32>
    %cst_7 = arith.constant dense<0.000000e+00> : vector<4x16xf32>
    %50 = vector.multi_reduction <add>, %49, %cst_7 [2] : vector<4x16x16xf32> to vector<4x16xf32>
    %51 = vector.shape_cast %50 : vector<4x16xf32> to vector<4x16x1xf32>
    %52 = tpu.reciprocal %51 : vector<4x16x1xf32> -> vector<4x16x1xf32>
    %53 = vector.broadcast %52 : vector<4x16x1xf32> to vector<4x16x16xf32>
    %54 = arith.mulf %49, %53 : vector<4x16x16xf32>
    "tpu.trace_start"() <{level = 10 : i32, message = "hqk,hkd->hqd"}> : () -> ()
    %cst_8 = arith.constant dense<0.000000e+00> : vector<4x16x8xf32>
    %55 = tpu.matmul %54, %40, %cst_8 {dimension_numbers = #tpu.dot_dimension_numbers<[2], [1], [1], [2], [0, 0, 0, 1, 1, 2], [0], [0]>} : vector<4x16x16xf32>, vector<4x16x8xf32>, vector<4x16x8xf32> -> vector<4x16x8xf32>
    "tpu.trace_stop"() : () -> ()
    %56 = vector.extract_strided_slice %55 {offsets = [0, 0, 0], sizes = [1, 16, 8], strides = [1, 1, 1]} : vector<4x16x8xf32> to vector<1x16x8xf32>
    %57 = vector.shape_cast %56 : vector<1x16x8xf32> to vector<16x8xf32>
    %58 = vector.extract_strided_slice %55 {offsets = [1, 0, 0], sizes = [1, 16, 8], strides = [1, 1, 1]} : vector<4x16x8xf32> to vector<1x16x8xf32>
    %59 = vector.shape_cast %58 : vector<1x16x8xf32> to vector<16x8xf32>
    %60 = vector.extract_strided_slice %55 {offsets = [2, 0, 0], sizes = [1, 16, 8], strides = [1, 1, 1]} : vector<4x16x8xf32> to vector<1x16x8xf32>
    %61 = vector.shape_cast %60 : vector<1x16x8xf32> to vector<16x8xf32>
    %62 = vector.extract_strided_slice %55 {offsets = [3, 0, 0], sizes = [1, 16, 8], strides = [1, 1, 1]} : vector<4x16x8xf32> to vector<1x16x8xf32>
    %63 = vector.shape_cast %62 : vector<1x16x8xf32> to vector<16x8xf32>
    %64 = tpu.concatenate %57, %59, %61, %63 in 1 : vector<16x8xf32>, vector<16x8xf32>, vector<16x8xf32>, vector<16x8xf32> -> vector<16x32xf32>
    %c0_9 = arith.constant 0 : index
    %c0_10 = arith.constant 0 : index
    %65 = vector.load %arg2[%c0_9, %c0_10] : memref<32x32xf32, #tpu.memory_space<vmem>>, vector<32x32xf32>
    %cst_11 = arith.constant dense<0.000000e+00> : vector<16x32xf32>
    %66 = tpu.matmul %64, %65, %cst_11 {dimension_numbers = #tpu.dot_dimension_numbers<[1], [0], [0], [1], [0, 0, 1, 1], [], []>} : vector<16x32xf32>, vector<32x32xf32>, vector<16x32xf32> -> vector<16x32xf32>
    %67 = vector.broadcast %4 : vector<1x32xf32> to vector<16x32xf32>
    %68 = arith.addf %66, %67 : vector<16x32xf32>
    %69 = arith.addf %68, %0 : vector<16x32xf32>
    %cst_12 = arith.constant dense<0.000000e+00> : vector<16xf32>
    %70 = vector.multi_reduction <add>, %69, %cst_12 [1] : vector<16x32xf32> to vector<16xf32>
    %71 = vector.shape_cast %70 : vector<16xf32> to vector<16x1xf32>
    %cst_13 = arith.constant 3.200000e+01 : f32
    %72 = vector.broadcast %cst_13 : f32 to vector<16x1xf32>
    %73 = arith.divf %71, %72 : vector<16x1xf32>
    %74 = vector.broadcast %73 : vector<16x1xf32> to vector<16x32xf32>
    %75 = arith.subf %69, %74 : vector<16x32xf32>
    %76 = arith.mulf %75, %75 : vector<16x32xf32>
    %cst_14 = arith.constant dense<0.000000e+00> : vector<16xf32>
    %77 = vector.multi_reduction <add>, %76, %cst_14 [1] : vector<16x32xf32> to vector<16xf32>
    %78 = vector.shape_cast %77 : vector<16xf32> to vector<16x1xf32>
    %cst_15 = arith.constant 3.200000e+01 : f32
    %79 = vector.broadcast %cst_15 : f32 to vector<16x1xf32>
    %80 = arith.divf %78, %79 : vector<16x1xf32>
    %81 = vector.broadcast %73 : vector<16x1xf32> to vector<16x32xf32>
    %82 = arith.subf %69, %81 : vector<16x32xf32>
    %cst_16 = arith.constant 9.99999996E-13 : f32
    %83 = vector.broadcast %cst_16 : f32 to vector<16x1xf32>
    %84 = arith.addf %80, %83 : vector<16x1xf32>
    %85 = math.rsqrt %84 : vector<16x1xf32>
    %86 = vector.broadcast %85 : vector<16x1xf32> to vector<16x32xf32>
    %87 = arith.mulf %82, %86 : vector<16x32xf32>
    %88 = vector.broadcast %5 : vector<1x32xf32> to vector<16x32xf32>
    %89 = arith.mulf %87, %88 : vector<16x32xf32>
    %90 = vector.broadcast %6 : vector<1x32xf32> to vector<16x32xf32>
    %91 = arith.addf %89, %90 : vector<16x32xf32>
    %c0_17 = arith.constant 0 : index
    %c0_18 = arith.constant 0 : index
    %92 = vector.load %arg4[%c0_17, %c0_18] : memref<16x32xf32, #tpu.memory_space<vmem>>, vector<16x32xf32>
    tpu.vector_store %arg4[%c0_17, %c0_18], %91 {strides = array<i32>} : memref<16x32xf32, #tpu.memory_space<vmem>>, vector<16x32xf32>,
    return
  }
}

</mosaic_0001>

<llo_original>
// kernel: bert_attention.1
$region0: #{bert_attention.1}
  #allocation0 [shape = 'u32[]', space=smem, size = 0x4, offset = 0x4, fixed_abs, tag = 'smem constant byte address 0x4 - core index']
  #allocation1 [shape = 'u32[144,128]{1,0:T(1,128)}', space=vmem, size = 0x12000, scoped, tag = 'internal scratch']
  %s0 = inlined_call_operand.hbm [shape: f32[16,32], index: 0, kind: input, shape index: {}]
  %s1 = inlined_call_operand.hbm [shape: f32[32,96], index: 1, kind: input, shape index: {}]
  %s2 = inlined_call_operand.hbm [shape: f32[32,32], index: 2, kind: input, shape index: {}]
  %s3 = inlined_call_operand.hbm [shape: f32[20,96], index: 3, kind: input, shape index: {}]
  %s4 = inlined_call_operand.hbm [shape: f32[16,32], index: 4, kind: output, shape index: {}]
  %s5 = sld [smem:[#allocation0]]
  $region42: #{bert_attention.1} parent=0
    _
  %s7 = ssub.s32 1, %s5
  %s8 = scalar_select 0, %s7, %s5
  $region1: #{bert_attention.1} parent=0
    #allocation2 [shape = 'u8[8192]{0}', space=vmem, size = 0x2000, scoped, tag = 'input window, operand 0, single buffered']
    #allocation3 [shape = 's32[1]{0}', space=sflag, size = 0x4, scoped, tag = 'scoped memory for bert_attention.1']
    #allocation4 [shape = 's32[1]{0}', space=sflag, size = 0x4, scoped, tag = 'scoped memory for bert_attention.1']
    #allocation5 [shape = 'u8[16384]{0}', space=vmem, size = 0x4000, scoped, tag = 'input window, operand 1, single buffered']
    #allocation6 [shape = 's32[1]{0}', space=sflag, size = 0x4, scoped, tag = 'scoped memory for bert_attention.1']
    #allocation7 [shape = 'u8[16384]{0}', space=vmem, size = 0x4000, scoped, tag = 'input window, operand 2, single buffered']
    #allocation8 [shape = 'u8[12288]{0}', space=vmem, size = 0x3000, scoped, tag = 'input window, operand 3, single buffered']
    #allocation9 [shape = 's32[1]{0}', space=sflag, size = 0x4, scoped, tag = 'scoped memory for bert_attention.1']
    #allocation10 [shape = 'u8[8192]{0}', space=vmem, size = 0x2000, scoped, tag = 'output window, operand 0, single buffered']
    %9 = vsyncpa [#allocation3], 0
    %10 = vsyncpa [#allocation6], 0
    %11 = vsyncpa [#allocation9], 0
    %12 = vsyncpa [#allocation4], 0
    // Predicated region
    $region2: #{bert_attention.1} parent=1 // pred_check
      _
    $region3: #{bert_attention.1} parent=1 // pred_check_branch
      %14 = sbr.rel (0) target = $region5
    $region4: #{bert_attention.1} parent=1 // pred_region
      %s16 = ssub.s32 256, 256
      %17 = vsyncadd [#allocation3], %s16
      %s18 = sshll.u32 [#allocation2], 4
      %s19 = int_to_ptr.vmem [resolvable:$true] %s18
      %24 = dma.hbm_to_vmem [thread:$0]  %s0, 256, %s19, [#allocation3], 128, 128, 8
    $region5: #{bert_attention.1} parent=1 // pred_fallthru
      _
    // Predicated region
    $region6: #{bert_attention.1} parent=1 // pred_check
      _
    $region7: #{bert_attention.1} parent=1 // pred_check_branch
      %26 = sbr.rel (0) target = $region9
    $region8: #{bert_attention.1} parent=1 // pred_region
      %s28 = ssub.s32 512, 512
      %29 = vsyncadd [#allocation6], %s28
      %s30 = sshll.u32 [#allocation5], 4
      %s31 = int_to_ptr.vmem [resolvable:$true] %s30
      %36 = dma.hbm_to_vmem [thread:$0]  %s1, 512, %s31, [#allocation6], 128, 128, 8
    $region9: #{bert_attention.1} parent=1 // pred_fallthru
      _
    // Predicated region
    $region10: #{bert_attention.1} parent=1 // pred_check
      _
    $region11: #{bert_attention.1} parent=1 // pred_check_branch
      %38 = sbr.rel (0) target = $region13
    $region12: #{bert_attention.1} parent=1 // pred_region
      %s40 = ssub.s32 512, 512
      %41 = vsyncadd [#allocation6], %s40
      %s42 = sshll.u32 [#allocation7], 4
      %s43 = int_to_ptr.vmem [resolvable:$true] %s42
      %48 = dma.hbm_to_vmem [thread:$0]  %s2, 512, %s43, [#allocation6], 128, 128, 8
    $region13: #{bert_attention.1} parent=1 // pred_fallthru
      _
    // Predicated region
    $region14: #{bert_attention.1} parent=1 // pred_check
      _
    $region15: #{bert_attention.1} parent=1 // pred_check_branch
      %50 = sbr.rel (0) target = $region17
    $region16: #{bert_attention.1} parent=1 // pred_region
      %s52 = ssub.s32 384, 384
      %53 = vsyncadd [#allocation9], %s52
      %s54 = sshll.u32 [#allocation8], 4
      %s55 = int_to_ptr.vmem [resolvable:$true] %s54
      %60 = dma.hbm_to_vmem [thread:$0]  %s3, 384, %s55, [#allocation9], 128, 128, 8
    $region17: #{bert_attention.1} parent=1 // pred_fallthru
      _
    // Predicated region
    $region18: #{bert_attention.1} parent=1 // pred_check
      _
    $region19: #{bert_attention.1} parent=1 // pred_check_branch
      %62 = sbr.rel (0) target = $region21
    $region20: #{bert_attention.1} parent=1 // pred_region
      %63 = dma.done [#allocation3], 256
    $region21: #{bert_attention.1} parent=1 // pred_fallthru
      _
    // Predicated region
    $region22: #{bert_attention.1} parent=1 // pred_check
      _
    $region23: #{bert_attention.1} parent=1 // pred_check_branch
      %65 = sbr.rel (0) target = $region25
    $region24: #{bert_attention.1} parent=1 // pred_region
      %66 = dma.done [#allocation6], 512
    $region25: #{bert_attention.1} parent=1 // pred_fallthru
      _
    // Predicated region
    $region26: #{bert_attention.1} parent=1 // pred_check
      _
    $region27: #{bert_attention.1} parent=1 // pred_check_branch
      %68 = sbr.rel (0) target = $region29
    $region28: #{bert_attention.1} parent=1 // pred_region
      %69 = dma.done [#allocation6], 512
    $region29: #{bert_attention.1} parent=1 // pred_fallthru
      _
    // Predicated region
    $region30: #{bert_attention.1} parent=1 // pred_check
      _
    $region31: #{bert_attention.1} parent=1 // pred_check_branch
      %71 = sbr.rel (0) target = $region33
    $region32: #{bert_attention.1} parent=1 // pred_region
      %72 = dma.done [#allocation9], 384
    $region33: #{bert_attention.1} parent=1 // pred_fallthru
      _
    %v73 = vld [vmem:[#allocation2] sm:$0xff]
    %v74 = vld [vmem:[#allocation2 + $0x8] sm:$0xff]
    %v75 = vld [vmem:[#allocation8] sm:$0xff]
    %v76 = vld [vmem:[#allocation8 + $0x8] sm:$0xff]
    %v77 = vld [vmem:[#allocation8 + $0x10] sm:$0xf]
    %v78 = vld [vmem:[#allocation5] sm:$0xff]
    %v79 = vld [vmem:[#allocation5 + $0x8] sm:$0xff]
    %v80 = vld [vmem:[#allocation5 + $0x10] sm:$0xff]
    %v81 = vld [vmem:[#allocation5 + $0x18] sm:$0xff]
    %v82 = vlaneseq
    %v83 = vshrl.u32 %v82, 7
    %v84 = vsub.s32 0, %v83
    %v85 = vrot.slane %v77, %v84
    %vm86 = vcmask 261120
    %v88 = vsel %vm86, %v73, 0
    %v91 = vsel %vm86, %v74, 0
    %93 = vmatprep.subr.mxu0 0.0
    %94 = vmatpush1.msra.mxu0 %v78
    %95 = vmatprep.subr.mxu0 0.0
    %96 = vmatpush1.msra.mxu0 %v79
    %97 = vmatprep.subr.mxu0 0.0
    %98 = vmatpush1.msra.mxu0 %v80
    %99 = vmatprep.subr.mxu0 0.0
    %100 = vmatpush1.msra.mxu0 %v81
    %101 = vmatprep.subr.mxu0 0.0
    %102 = vmatpush1.msra.mxu0 0.0
    %103 = vmatprep.subr.mxu0 0.0
    %104 = vmatpush1.msra.mxu0 0.0
    %105 = vmatprep.subr.mxu0 0.0
    %106 = vmatpush1.msra.mxu0 0.0
    %107 = vmatprep.subr.mxu0 0.0
    %108 = vmatpush1.msra.mxu0 0.0
    %109 = vmatprep.subr.mxu0 0.0
    %110 = vmatpush1.msra.mxu0 0.0
    %111 = vmatprep.subr.mxu0 0.0
    %112 = vmatpush1.msra.mxu0 0.0
    %113 = vmatprep.subr.mxu0 0.0
    %114 = vmatpush1.msra.mxu0 0.0
    %115 = vmatprep.subr.mxu0 0.0
    %116 = vmatpush1.msra.mxu0 0.0
    %117 = vmatprep.subr.mxu0 0.0
    %118 = vmatpush1.msra.mxu0 0.0
    %119 = vmatprep.subr.mxu0 0.0
    %120 = vmatpush1.msra.mxu0 0.0
    %121 = vmatprep.subr.mxu0 0.0
    %122 = vmatpush1.msra.mxu0 0.0
    %123 = vmatprep.subr.mxu0 0.0
    %124 = vmatpush1.msra.mxu0 0.0
    %125 = vmatprep.subr.mxu0 0.0
    %126 = vmatpush1.msra.mxu0 0.0
    %127 = vmatprep.subr.mxu0 0.0
    %128 = vmatpush1.msra.mxu0 0.0
    %129 = vmatprep.subr.mxu0 0.0
    %130 = vmatpush1.msra.mxu0 0.0
    %131 = vmatprep.subr.mxu0 0.0
    %132 = vmatpush1.msra.mxu0 0.0
    %133 = vmatprep.subr.mxu0 0.0
    %134 = vmatpush1.msra.mxu0 0.0
    %135 = vmatprep.subr.mxu0 0.0
    %136 = vmatpush1.msra.mxu0 0.0
    %137 = vmatprep.subr.mxu0 0.0
    %138 = vmatpush1.msra.mxu0 0.0
    %139 = vmatprep.subr.mxu0 0.0
    %140 = vmatpush1.msra.mxu0 0.0
    %141 = vmatprep.subr.mxu0 0.0
    %142 = vmatpush1.msra.mxu0 0.0
    %143 = vmatprep.subr.mxu0 0.0
    %144 = vmatpush1.msra.mxu0 0.0
    %145 = vmatprep.subr.mxu0 0.0
    %146 = vmatpush1.msra.mxu0 0.0
    %147 = vmatprep.subr.mxu0 0.0
    %148 = vmatpush1.msra.mxu0 0.0
    %149 = vmatprep.subr.mxu0 0.0
    %150 = vmatpush1.msra.mxu0 0.0
    %151 = vmatprep.subr.mxu0 0.0
    %152 = vmatpush1.msra.mxu0 0.0
    %153 = vmatprep.subr.mxu0 0.0
    %154 = vmatpush1.msra.mxu0 0.0
    %155 = vmatprep.subr.mxu0 0.0
    %156 = vmatpush1.msra.mxu0 0.0
    %157 = vmatprep.mubr.f32.mxu0 0.0
    %158 = vmatmul.mubr.f32.gmra.mrb[0].mxu0 %v88
    %v159 = vpop.f32.mrb[0].mxu0
    %v160 = vadd.f32 %v85, %v159
    %v161 = vpop.f32.mrb[0].mxu0
    %162 = vmatprep.mubr.f32.mxu0 0.0
    %163 = vmatmul.mubr.f32.gmra.mrb[0].mxu0 %v91
    %v164 = vpop.f32.mrb[0].mxu0
    %v165 = vadd.f32 %v85, %v164
    %v166 = vpop.f32.mrb[0].mxu0
    %167 = vdwg.mxu0
    %170 = vrot.lane.b32.xlu0 %v160, 120
    %v171 = vpop.permute.xlu0 %170
    %172 = vrot.lane.b32.xlu0 %v165, 120
    %v173 = vpop.permute.xlu0 %172
    %174 = vrot.lane.b32.xlu0 %v160, 112
    %v175 = vpop.permute.xlu0 %174
    %176 = vrot.lane.b32.xlu0 %v165, 112
    %v177 = vpop.permute.xlu0 %176
    %178 = vrot.lane.b32.xlu0 %v160, 104
    %v179 = vpop.permute.xlu0 %178
    %180 = vrot.lane.b32.xlu0 %v165, 104
    %v181 = vpop.permute.xlu0 %180
    %182 = vrot.lane.b32.xlu0 %v160, 96
    %v183 = vpop.permute.xlu0 %182
    %184 = vrot.lane.b32.xlu0 %v165, 96
    %v185 = vpop.permute.xlu0 %184
    %vm186 = vcmask 64512
    %v187 = vsel %vm186, %v160, 0
    %v189 = vsel %vm186, %v165, 0
    %v191 = vsel %vm186, %v183, 0
    %v193 = vsel %vm186, %v185, 0
    %195 = vmatprep.subr.mxu0 0.0
    %196 = vmatpush1.xpose.msra.mxu0 %v191
    %197 = vmatprep.subr.mxu0 0.0
    %198 = vmatpush1.xpose.msra.mxu0 %v193
    %199 = vmatprep.subr.mxu0 0.0
    %200 = vmatpush1.xpose.msra.mxu0 0.0
    %201 = vmatprep.subr.mxu0 0.0
    %202 = vmatpush1.xpose.msra.mxu0 0.0
    %203 = vmatprep.subr.mxu0 0.0
    %204 = vmatpush1.xpose.msra.mxu0 0.0
    %205 = vmatprep.subr.mxu0 0.0
    %206 = vmatpush1.xpose.msra.mxu0 0.0
    %207 = vmatprep.subr.mxu0 0.0
    %208 = vmatpush1.xpose.msra.mxu0 0.0
    %209 = vmatprep.subr.mxu0 0.0
    %210 = vmatpush1.xpose.msra.mxu0 0.0
    %211 = vmatprep.subr.mxu0 0.0
    %212 = vmatpush1.xpose.msra.mxu0 0.0
    %213 = vmatprep.subr.mxu0 0.0
    %214 = vmatpush1.xpose.msra.mxu0 0.0
    %215 = vmatprep.subr.mxu0 0.0
    %216 = vmatpush1.xpose.msra.mxu0 0.0
    %217 = vmatprep.subr.mxu0 0.0
    %218 = vmatpush1.xpose.msra.mxu0 0.0
    %219 = vmatprep.subr.mxu0 0.0
    %220 = vmatpush1.xpose.msra.mxu0 0.0
    %221 = vmatprep.subr.mxu0 0.0
    %222 = vmatpush1.xpose.msra.mxu0 0.0
    %223 = vmatprep.subr.mxu0 0.0
    %224 = vmatpush1.xpose.msra.mxu0 0.0
    %225 = vmatprep.subr.mxu0 0.0
    %226 = vmatpush1.xpose.msra.mxu0 0.0
    %227 = vmatprep.subr.mxu0 0.0
    %228 = vmatpush1.xpose.msra.mxu0 0.0
    %229 = vmatprep.subr.mxu0 0.0
    %230 = vmatpush1.xpose.msra.mxu0 0.0
    %231 = vmatprep.subr.mxu0 0.0
    %232 = vmatpush1.xpose.msra.mxu0 0.0
    %233 = vmatprep.subr.mxu0 0.0
    %234 = vmatpush1.xpose.msra.mxu0 0.0
    %235 = vmatprep.subr.mxu0 0.0
    %236 = vmatpush1.xpose.msra.mxu0 0.0
    %237 = vmatprep.subr.mxu0 0.0
    %238 = vmatpush1.xpose.msra.mxu0 0.0
    %239 = vmatprep.subr.mxu0 0.0
    %240 = vmatpush1.xpose.msra.mxu0 0.0
    %241 = vmatprep.subr.mxu0 0.0
    %242 = vmatpush1.xpose.msra.mxu0 0.0
    %243 = vmatprep.subr.mxu0 0.0
    %244 = vmatpush1.xpose.msra.mxu0 0.0
    %245 = vmatprep.subr.mxu0 0.0
    %246 = vmatpush1.xpose.msra.mxu0 0.0
    %247 = vmatprep.subr.mxu0 0.0
    %248 = vmatpush1.xpose.msra.mxu0 0.0
    %249 = vmatprep.subr.mxu0 0.0
    %250 = vmatpush1.xpose.msra.mxu0 0.0
    %251 = vmatprep.subr.mxu0 0.0
    %252 = vmatpush1.xpose.msra.mxu0 0.0
    %253 = vmatprep.subr.mxu0 0.0
    %254 = vmatpush1.xpose.msra.mxu0 0.0
    %255 = vmatprep.subr.mxu0 0.0
    %256 = vmatpush1.xpose.msra.mxu0 0.0
    %257 = vmatprep.subr.mxu0 0.0
    %258 = vmatpush1.xpose.msra.mxu0 0.0
    %259 = vmatprep.mubr.f32.mxu0 0.0
    %260 = vmatmul.mubr.f32.gmra.mrb[0].mxu0 %v187
    %v261 = vpop.f32.mrb[0].mxu0
    %v262 = vadd.f32 %v75, %v261
    %v263 = vpop.f32.mrb[0].mxu0
    %264 = vmatprep.mubr.f32.mxu0 0.0
    %265 = vmatmul.mubr.f32.gmra.mrb[0].mxu0 %v189
    %v266 = vpop.f32.mrb[0].mxu0
    %v267 = vadd.f32 %v76, %v266
    %v268 = vpop.f32.mrb[0].mxu0
    %269 = vdwg.mxu0
    %270 = vrot.lane.b32.xlu0 %v171, 96
    %v271 = vpop.permute.xlu0 %270
    %272 = vrot.lane.b32.xlu0 %v173, 96
    %v273 = vpop.permute.xlu0 %272
    %v274 = vsel %vm186, %v171, 0
    %v276 = vsel %vm186, %v173, 0
    %v278 = vsel %vm186, %v271, 0
    %v280 = vsel %vm186, %v273, 0
    %282 = vmatprep.subr.mxu0 0.0
    %283 = vmatpush1.xpose.msra.mxu0 %v278
    %284 = vmatprep.subr.mxu0 0.0
    %285 = vmatpush1.xpose.msra.mxu0 %v280
    %286 = vmatprep.subr.mxu0 0.0
    %287 = vmatpush1.xpose.msra.mxu0 0.0
    %288 = vmatprep.subr.mxu0 0.0
    %289 = vmatpush1.xpose.msra.mxu0 0.0
    %290 = vmatprep.subr.mxu0 0.0
    %291 = vmatpush1.xpose.msra.mxu0 0.0
    %292 = vmatprep.subr.mxu0 0.0
    %293 = vmatpush1.xpose.msra.mxu0 0.0
    %294 = vmatprep.subr.mxu0 0.0
    %295 = vmatpush1.xpose.msra.mxu0 0.0
    %296 = vmatprep.subr.mxu0 0.0
    %297 = vmatpush1.xpose.msra.mxu0 0.0
    %298 = vmatprep.subr.mxu0 0.0
    %299 = vmatpush1.xpose.msra.mxu0 0.0
    %300 = vmatprep.subr.mxu0 0.0
    %301 = vmatpush1.xpose.msra.mxu0 0.0
    %302 = vmatprep.subr.mxu0 0.0
    %303 = vmatpush1.xpose.msra.mxu0 0.0
    %304 = vmatprep.subr.mxu0 0.0
    %305 = vmatpush1.xpose.msra.mxu0 0.0
    %306 = vmatprep.subr.mxu0 0.0
    %307 = vmatpush1.xpose.msra.mxu0 0.0
    %308 = vmatprep.subr.mxu0 0.0
    %309 = vmatpush1.xpose.msra.mxu0 0.0
    %310 = vmatprep.subr.mxu0 0.0
    %311 = vmatpush1.xpose.msra.mxu0 0.0
    %312 = vmatprep.subr.mxu0 0.0
    %313 = vmatpush1.xpose.msra.mxu0 0.0
    %314 = vmatprep.subr.mxu0 0.0
    %315 = vmatpush1.xpose.msra.mxu0 0.0
    %316 = vmatprep.subr.mxu0 0.0
    %317 = vmatpush1.xpose.msra.mxu0 0.0
    %318 = vmatprep.subr.mxu0 0.0
    %319 = vmatpush1.xpose.msra.mxu0 0.0
    %320 = vmatprep.subr.mxu0 0.0
    %321 = vmatpush1.xpose.msra.mxu0 0.0
    %322 = vmatprep.subr.mxu0 0.0
    %323 = vmatpush1.xpose.msra.mxu0 0.0
    %324 = vmatprep.subr.mxu0 0.0
    %325 = vmatpush1.xpose.msra.mxu0 0.0
    %326 = vmatprep.subr.mxu0 0.0
    %327 = vmatpush1.xpose.msra.mxu0 0.0
    %328 = vmatprep.subr.mxu0 0.0
    %329 = vmatpush1.xpose.msra.mxu0 0.0
    %330 = vmatprep.subr.mxu0 0.0
    %331 = vmatpush1.xpose.msra.mxu0 0.0
    %332 = vmatprep.subr.mxu0 0.0
    %333 = vmatpush1.xpose.msra.mxu0 0.0
    %334 = vmatprep.subr.mxu0 0.0
    %335 = vmatpush1.xpose.msra.mxu0 0.0
    %336 = vmatprep.subr.mxu0 0.0
    %337 = vmatpush1.xpose.msra.mxu0 0.0
    %338 = vmatprep.subr.mxu0 0.0
    %339 = vmatpush1.xpose.msra.mxu0 0.0
    %340 = vmatprep.subr.mxu0 0.0
    %341 = vmatpush1.xpose.msra.mxu0 0.0
    %342 = vmatprep.subr.mxu0 0.0
    %343 = vmatpush1.xpose.msra.mxu0 0.0
    %344 = vmatprep.subr.mxu0 0.0
    %345 = vmatpush1.xpose.msra.mxu0 0.0
    %346 = vmatprep.mubr.f32.mxu0 0.0
    %347 = vmatmul.mubr.f32.gmra.mrb[0].mxu0 %v274
    %v348 = vpop.f32.mrb[0].mxu0
    %v349 = vadd.f32 %v75, %v348
    %v350 = vpop.f32.mrb[0].mxu0
    %351 = vmatprep.mubr.f32.mxu0 0.0
    %352 = vmatmul.mubr.f32.gmra.mrb[0].mxu0 %v276
    %v353 = vpop.f32.mrb[0].mxu0
    %v354 = vadd.f32 %v76, %v353
    %v355 = vpop.f32.mrb[0].mxu0
    %356 = vdwg.mxu0
    %357 = vrot.lane.b32.xlu0 %v175, 96
    %v358 = vpop.permute.xlu0 %357
    %359 = vrot.lane.b32.xlu0 %v177, 96
    %v360 = vpop.permute.xlu0 %359
    %v361 = vsel %vm186, %v175, 0
    %v363 = vsel %vm186, %v177, 0
    %v365 = vsel %vm186, %v358, 0
    %v367 = vsel %vm186, %v360, 0
    %369 = vmatprep.subr.mxu0 0.0
    %370 = vmatpush1.xpose.msra.mxu0 %v365
    %371 = vmatprep.subr.mxu0 0.0
    %372 = vmatpush1.xpose.msra.mxu0 %v367
    %373 = vmatprep.subr.mxu0 0.0
    %374 = vmatpush1.xpose.msra.mxu0 0.0
    %375 = vmatprep.subr.mxu0 0.0
    %376 = vmatpush1.xpose.msra.mxu0 0.0
    %377 = vmatprep.subr.mxu0 0.0
    %378 = vmatpush1.xpose.msra.mxu0 0.0
    %379 = vmatprep.subr.mxu0 0.0
    %380 = vmatpush1.xpose.msra.mxu0 0.0
    %381 = vmatprep.subr.mxu0 0.0
    %382 = vmatpush1.xpose.msra.mxu0 0.0
    %383 = vmatprep.subr.mxu0 0.0
    %384 = vmatpush1.xpose.msra.mxu0 0.0
    %385 = vmatprep.subr.mxu0 0.0
    %386 = vmatpush1.xpose.msra.mxu0 0.0
    %387 = vmatprep.subr.mxu0 0.0
    %388 = vmatpush1.xpose.msra.mxu0 0.0
    %389 = vmatprep.subr.mxu0 0.0
    %390 = vmatpush1.xpose.msra.mxu0 0.0
    %391 = vmatprep.subr.mxu0 0.0
    %392 = vmatpush1.xpose.msra.mxu0 0.0
    %393 = vmatprep.subr.mxu0 0.0
    %394 = vmatpush1.xpose.msra.mxu0 0.0
    %395 = vmatprep.subr.mxu0 0.0
    %396 = vmatpush1.xpose.msra.mxu0 0.0
    %397 = vmatprep.subr.mxu0 0.0
    %398 = vmatpush1.xpose.msra.mxu0 0.0
    %399 = vmatprep.subr.mxu0 0.0
    %400 = vmatpush1.xpose.msra.mxu0 0.0
    %401 = vmatprep.subr.mxu0 0.0
    %402 = vmatpush1.xpose.msra.mxu0 0.0
    %403 = vmatprep.subr.mxu0 0.0
    %404 = vmatpush1.xpose.msra.mxu0 0.0
    %405 = vmatprep.subr.mxu0 0.0
    %406 = vmatpush1.xpose.msra.mxu0 0.0
    %407 = vmatprep.subr.mxu0 0.0
    %408 = vmatpush1.xpose.msra.mxu0 0.0
    %409 = vmatprep.subr.mxu0 0.0
    %410 = vmatpush1.xpose.msra.mxu0 0.0
    %411 = vmatprep.subr.mxu0 0.0
    %412 = vmatpush1.xpose.msra.mxu0 0.0
    %413 = vmatprep.subr.mxu0 0.0
    %414 = vmatpush1.xpose.msra.mxu0 0.0
    %415 = vmatprep.subr.mxu0 0.0
    %416 = vmatpush1.xpose.msra.mxu0 0.0
    %417 = vmatprep.subr.mxu0 0.0
    %418 = vmatpush1.xpose.msra.mxu0 0.0
    %419 = vmatprep.subr.mxu0 0.0
    %420 = vmatpush1.xpose.msra.mxu0 0.0
    %421 = vmatprep.subr.mxu0 0.0
    %422 = vmatpush1.xpose.msra.mxu0 0.0
    %423 = vmatprep.subr.mxu0 0.0
    %424 = vmatpush1.xpose.msra.mxu0 0.0
    %425 = vmatprep.subr.mxu0 0.0
    %426 = vmatpush1.xpose.msra.mxu0 0.0
    %427 = vmatprep.subr.mxu0 0.0
    %428 = vmatpush1.xpose.msra.mxu0 0.0
    %429 = vmatprep.subr.mxu0 0.0
    %430 = vmatpush1.xpose.msra.mxu0 0.0
    %431 = vmatprep.subr.mxu0 0.0
    %432 = vmatpush1.xpose.msra.mxu0 0.0
    %433 = vmatprep.mubr.f32.mxu0 0.0
    %434 = vmatmul.mubr.f32.gmra.mrb[0].mxu0 %v361
    %v435 = vpop.f32.mrb[0].mxu0
    %v436 = vadd.f32 %v75, %v435
    %v437 = vpop.f32.mrb[0].mxu0
    %438 = vmatprep.mubr.f32.mxu0 0.0
    %439 = vmatmul.mubr.f32.gmra.mrb[0].mxu0 %v363
    %v440 = vpop.f32.mrb[0].mxu0
    %v441 = vadd.f32 %v76, %v440
    %v442 = vpop.f32.mrb[0].mxu0
    %443 = vdwg.mxu0
    %444 = vrot.lane.b32.xlu0 %v179, 96
    %v445 = vpop.permute.xlu0 %444
    %446 = vrot.lane.b32.xlu0 %v181, 96
    %v447 = vpop.permute.xlu0 %446
    %v448 = vsel %vm186, %v179, 0
    %v450 = vsel %vm186, %v181, 0
    %v452 = vsel %vm186, %v445, 0
    %v454 = vsel %vm186, %v447, 0
    %456 = vmatprep.subr.mxu0 0.0
    %457 = vmatpush1.xpose.msra.mxu0 %v452
    %458 = vmatprep.subr.mxu0 0.0
    %459 = vmatpush1.xpose.msra.mxu0 %v454
    %460 = vmatprep.subr.mxu0 0.0
    %461 = vmatpush1.xpose.msra.mxu0 0.0
    %462 = vmatprep.subr.mxu0 0.0
    %463 = vmatpush1.xpose.msra.mxu0 0.0
    %464 = vmatprep.subr.mxu0 0.0
    %465 = vmatpush1.xpose.msra.mxu0 0.0
    %466 = vmatprep.subr.mxu0 0.0
    %467 = vmatpush1.xpose.msra.mxu0 0.0
    %468 = vmatprep.subr.mxu0 0.0
    %469 = vmatpush1.xpose.msra.mxu0 0.0
    %470 = vmatprep.subr.mxu0 0.0
    %471 = vmatpush1.xpose.msra.mxu0 0.0
    %472 = vmatprep.subr.mxu0 0.0
    %473 = vmatpush1.xpose.msra.mxu0 0.0
    %474 = vmatprep.subr.mxu0 0.0
    %475 = vmatpush1.xpose.msra.mxu0 0.0
    %476 = vmatprep.subr.mxu0 0.0
    %477 = vmatpush1.xpose.msra.mxu0 0.0
    %478 = vmatprep.subr.mxu0 0.0
    %479 = vmatpush1.xpose.msra.mxu0 0.0
    %480 = vmatprep.subr.mxu0 0.0
    %481 = vmatpush1.xpose.msra.mxu0 0.0
    %482 = vmatprep.subr.mxu0 0.0
    %483 = vmatpush1.xpose.msra.mxu0 0.0
    %484 = vmatprep.subr.mxu0 0.0
    %485 = vmatpush1.xpose.msra.mxu0 0.0
    %486 = vmatprep.subr.mxu0 0.0
    %487 = vmatpush1.xpose.msra.mxu0 0.0
    %488 = vmatprep.subr.mxu0 0.0
    %489 = vmatpush1.xpose.msra.mxu0 0.0
    %490 = vmatprep.subr.mxu0 0.0
    %491 = vmatpush1.xpose.msra.mxu0 0.0
    %492 = vmatprep.subr.mxu0 0.0
    %493 = vmatpush1.xpose.msra.mxu0 0.0
    %494 = vmatprep.subr.mxu0 0.0
    %495 = vmatpush1.xpose.msra.mxu0 0.0
    %496 = vmatprep.subr.mxu0 0.0
    %497 = vmatpush1.xpose.msra.mxu0 0.0
    %498 = vmatprep.subr.mxu0 0.0
    %499 = vmatpush1.xpose.msra.mxu0 0.0
    %500 = vmatprep.subr.mxu0 0.0
    %501 = vmatpush1.xpose.msra.mxu0 0.0
    %502 = vmatprep.subr.mxu0 0.0
    %503 = vmatpush1.xpose.msra.mxu0 0.0
    %504 = vmatprep.subr.mxu0 0.0
    %505 = vmatpush1.xpose.msra.mxu0 0.0
    %506 = vmatprep.subr.mxu0 0.0
    %507 = vmatpush1.xpose.msra.mxu0 0.0
    %508 = vmatprep.subr.mxu0 0.0
    %509 = vmatpush1.xpose.msra.mxu0 0.0
    %510 = vmatprep.subr.mxu0 0.0
    %511 = vmatpush1.xpose.msra.mxu0 0.0
    %512 = vmatprep.subr.mxu0 0.0
    %513 = vmatpush1.xpose.msra.mxu0 0.0
    %514 = vmatprep.subr.mxu0 0.0
    %515 = vmatpush1.xpose.msra.mxu0 0.0
    %516 = vmatprep.subr.mxu0 0.0
    %517 = vmatpush1.xpose.msra.mxu0 0.0
    %518 = vmatprep.subr.mxu0 0.0
    %519 = vmatpush1.xpose.msra.mxu0 0.0
    %520 = vmatprep.mubr.f32.mxu0 0.0
    %521 = vmatmul.mubr.f32.gmra.mrb[0].mxu0 %v448
    %v522 = vpop.f32.mrb[0].mxu0
    %v523 = vadd.f32 %v75, %v522
    %v524 = vpop.f32.mrb[0].mxu0
    %525 = vmatprep.mubr.f32.mxu0 0.0
    %526 = vmatmul.mubr.f32.gmra.mrb[0].mxu0 %v450
    %v527 = vpop.f32.mrb[0].mxu0
    %v528 = vadd.f32 %v76, %v527
    %v529 = vpop.f32.mrb[0].mxu0
    %530 = vdwg.mxu0
    %vm531 = vcmask 130048
    %v532 = vsel %vm531, %v262, -inf
    %533 = vmax.xlane.f32.xlu0 %v532
    %v534 = vpop.xlane.xlu0 %533
    %v535 = vsel %vm531, %v267, -inf
    %536 = vmax.xlane.f32.xlu0 %v535
    %v537 = vpop.xlane.xlu0 %536
    %v538 = vsel %vm531, %v349, -inf
    %539 = vmax.xlane.f32.xlu0 %v538
    %v540 = vpop.xlane.xlu0 %539
    %v541 = vsel %vm531, %v354, -inf
    %542 = vmax.xlane.f32.xlu0 %v541
    %v543 = vpop.xlane.xlu0 %542
    %v544 = vsel %vm531, %v436, -inf
    %545 = vmax.xlane.f32.xlu0 %v544
    %v546 = vpop.xlane.xlu0 %545
    %v547 = vsel %vm531, %v441, -inf
    %548 = vmax.xlane.f32.xlu0 %v547
    %v549 = vpop.xlane.xlu0 %548
    %v550 = vsel %vm531, %v523, -inf
    %551 = vmax.xlane.f32.xlu0 %v550
    %v552 = vpop.xlane.xlu0 %551
    %v553 = vsel %vm531, %v528, -inf
    %554 = vmax.xlane.f32.xlu0 %v553
    %v555 = vpop.xlane.xlu0 %554
    %v556 = vsub.f32 %v262, %v534
    %v557 = vsub.f32 %v267, %v537
    %v558 = vsub.f32 %v349, %v540
    %v559 = vsub.f32 %v354, %v543
    %v560 = vsub.f32 %v436, %v546
    %v561 = vsub.f32 %v441, %v549
    %v562 = vsub.f32 %v523, %v552
    %v563 = vsub.f32 %v528, %v555
    %v564 = vmul.f32 %v556, 1.442695
    %v565 = vpow.pop %v564
    %v566 = vmul.f32 %v557, 1.442695
    %v567 = vpow.pop %v566
    %v568 = vmul.f32 %v558, 1.442695
    %v569 = vpow.pop %v568
    %v570 = vmul.f32 %v559, 1.442695
    %v571 = vpow.pop %v570
    %v572 = vmul.f32 %v560, 1.442695
    %v573 = vpow.pop %v572
    %v574 = vmul.f32 %v561, 1.442695
    %v575 = vpow.pop %v574
    %v576 = vmul.f32 %v562, 1.442695
    %v577 = vpow.pop %v576
    %v578 = vmul.f32 %v563, 1.442695
    %v579 = vpow.pop %v578
    %v580 = vsel %vm531, %v565, 0.0
    %581 = vadd.xlane.f32.xlu0 %v580
    %v582 = vpop.xlane.xlu0 %581
    %v583 = vsel %vm531, %v567, 0.0
    %584 = vadd.xlane.f32.xlu0 %v583
    %v585 = vpop.xlane.xlu0 %584
    %v586 = vsel %vm531, %v569, 0.0
    %587 = vadd.xlane.f32.xlu0 %v586
    %v588 = vpop.xlane.xlu0 %587
    %v589 = vsel %vm531, %v571, 0.0
    %590 = vadd.xlane.f32.xlu0 %v589
    %v591 = vpop.xlane.xlu0 %590
    %v592 = vsel %vm531, %v573, 0.0
    %593 = vadd.xlane.f32.xlu0 %v592
    %v594 = vpop.xlane.xlu0 %593
    %v595 = vsel %vm531, %v575, 0.0
    %596 = vadd.xlane.f32.xlu0 %v595
    %v597 = vpop.xlane.xlu0 %596
    %v598 = vsel %vm531, %v577, 0.0
    %599 = vadd.xlane.f32.xlu0 %v598
    %v600 = vpop.xlane.xlu0 %599
    %v601 = vsel %vm531, %v579, 0.0
    %602 = vadd.xlane.f32.xlu0 %v601
    %v603 = vpop.xlane.xlu0 %602
    %v604 = vrcp.pop %v582
    %v605 = vrcp.pop %v585
    %v606 = vrcp.pop %v588
    %v607 = vrcp.pop %v591
    %v608 = vrcp.pop %v594
    %v609 = vrcp.pop %v597
    %v610 = vrcp.pop %v600
    %v611 = vrcp.pop %v603
    %v612 = vmul.f32 %v565, %v604
    %v613 = vmul.f32 %v567, %v605
    %v614 = vmul.f32 %v569, %v606
    %v615 = vmul.f32 %v571, %v607
    %v616 = vmul.f32 %v573, %v608
    %v617 = vmul.f32 %v575, %v609
    %v618 = vmul.f32 %v577, %v610
    %v619 = vmul.f32 %v579, %v611
    %620 = vrot.lane.b32.xlu0 %v160, 64
    %v621 = vpop.permute.xlu0 %620
    %622 = vrot.lane.b32.xlu0 %v165, 64
    %v623 = vpop.permute.xlu0 %622
    %v627 = vsel %vm531, %v612, 0
    %v630 = vsel %vm531, %v613, 0
    %632 = vmatprep.subr.mxu0 0.0
    %633 = vmatpush1.msra.mxu0 %v621
    %634 = vmatprep.subr.mxu0 0.0
    %635 = vmatpush1.msra.mxu0 %v623
    %636 = vmatprep.subr.mxu0 0.0
    %637 = vmatpush1.msra.mxu0 0.0
    %638 = vmatprep.subr.mxu0 0.0
    %639 = vmatpush1.msra.mxu0 0.0
    %640 = vmatprep.subr.mxu0 0.0
    %641 = vmatpush1.msra.mxu0 0.0
    %642 = vmatprep.subr.mxu0 0.0
    %643 = vmatpush1.msra.mxu0 0.0
    %644 = vmatprep.subr.mxu0 0.0
    %645 = vmatpush1.msra.mxu0 0.0
    %646 = vmatprep.subr.mxu0 0.0
    %647 = vmatpush1.msra.mxu0 0.0
    %648 = vmatprep.subr.mxu0 0.0
    %649 = vmatpush1.msra.mxu0 0.0
    %650 = vmatprep.subr.mxu0 0.0
    %651 = vmatpush1.msra.mxu0 0.0
    %652 = vmatprep.subr.mxu0 0.0
    %653 = vmatpush1.msra.mxu0 0.0
    %654 = vmatprep.subr.mxu0 0.0
    %655 = vmatpush1.msra.mxu0 0.0
    %656 = vmatprep.subr.mxu0 0.0
    %657 = vmatpush1.msra.mxu0 0.0
    %658 = vmatprep.subr.mxu0 0.0
    %659 = vmatpush1.msra.mxu0 0.0
    %660 = vmatprep.subr.mxu0 0.0
    %661 = vmatpush1.msra.mxu0 0.0
    %662 = vmatprep.subr.mxu0 0.0
    %663 = vmatpush1.msra.mxu0 0.0
    %664 = vmatprep.subr.mxu0 0.0
    %665 = vmatpush1.msra.mxu0 0.0
    %666 = vmatprep.subr.mxu0 0.0
    %667 = vmatpush1.msra.mxu0 0.0
    %668 = vmatprep.subr.mxu0 0.0
    %669 = vmatpush1.msra.mxu0 0.0
    %670 = vmatprep.subr.mxu0 0.0
    %671 = vmatpush1.msra.mxu0 0.0
    %672 = vmatprep.subr.mxu0 0.0
    %673 = vmatpush1.msra.mxu0 0.0
    %674 = vmatprep.subr.mxu0 0.0
    %675 = vmatpush1.msra.mxu0 0.0
    %676 = vmatprep.subr.mxu0 0.0
    %677 = vmatpush1.msra.mxu0 0.0
    %678 = vmatprep.subr.mxu0 0.0
    %679 = vmatpush1.msra.mxu0 0.0
    %680 = vmatprep.subr.mxu0 0.0
    %681 = vmatpush1.msra.mxu0 0.0
    %682 = vmatprep.subr.mxu0 0.0
    %683 = vmatpush1.msra.mxu0 0.0
    %684 = vmatprep.subr.mxu0 0.0
    %685 = vmatpush1.msra.mxu0 0.0
    %686 = vmatprep.subr.mxu0 0.0
    %687 = vmatpush1.msra.mxu0 0.0
    %688 = vmatprep.subr.mxu0 0.0
    %689 = vmatpush1.msra.mxu0 0.0
    %690 = vmatprep.subr.mxu0 0.0
    %691 = vmatpush1.msra.mxu0 0.0
    %692 = vmatprep.subr.mxu0 0.0
    %693 = vmatpush1.msra.mxu0 0.0
    %694 = vmatprep.subr.mxu0 0.0
    %695 = vmatpush1.msra.mxu0 0.0
    %696 = vmatprep.mubr.f32.mxu0 0.0
    %697 = vmatmul.mubr.f32.gmra.mrb[0].mxu0 %v627
    %v698 = vpop.f32.mrb[0].mxu0
    %v699 = vadd.f32 0.0, %v698
    %v700 = vpop.f32.mrb[0].mxu0
    %701 = vmatprep.mubr.f32.mxu0 0.0
    %702 = vmatmul.mubr.f32.gmra.mrb[0].mxu0 %v630
    %v703 = vpop.f32.mrb[0].mxu0
    %v704 = vadd.f32 0.0, %v703
    %v705 = vpop.f32.mrb[0].mxu0
    %706 = vdwg.mxu0
    %707 = vrot.lane.b32.xlu0 %v171, 64
    %v708 = vpop.permute.xlu0 %707
    %709 = vrot.lane.b32.xlu0 %v173, 64
    %v710 = vpop.permute.xlu0 %709
    %v714 = vsel %vm531, %v614, 0
    %v717 = vsel %vm531, %v615, 0
    %719 = vmatprep.subr.mxu0 0.0
    %720 = vmatpush1.msra.mxu0 %v708
    %721 = vmatprep.subr.mxu0 0.0
    %722 = vmatpush1.msra.mxu0 %v710
    %723 = vmatprep.subr.mxu0 0.0
    %724 = vmatpush1.msra.mxu0 0.0
    %725 = vmatprep.subr.mxu0 0.0
    %726 = vmatpush1.msra.mxu0 0.0
    %727 = vmatprep.subr.mxu0 0.0
    %728 = vmatpush1.msra.mxu0 0.0
    %729 = vmatprep.subr.mxu0 0.0
    %730 = vmatpush1.msra.mxu0 0.0
    %731 = vmatprep.subr.mxu0 0.0
    %732 = vmatpush1.msra.mxu0 0.0
    %733 = vmatprep.subr.mxu0 0.0
    %734 = vmatpush1.msra.mxu0 0.0
    %735 = vmatprep.subr.mxu0 0.0
    %736 = vmatpush1.msra.mxu0 0.0
    %737 = vmatprep.subr.mxu0 0.0
    %738 = vmatpush1.msra.mxu0 0.0
    %739 = vmatprep.subr.mxu0 0.0
    %740 = vmatpush1.msra.mxu0 0.0
    %741 = vmatprep.subr.mxu0 0.0
    %742 = vmatpush1.msra.mxu0 0.0
    %743 = vmatprep.subr.mxu0 0.0
    %744 = vmatpush1.msra.mxu0 0.0
    %745 = vmatprep.subr.mxu0 0.0
    %746 = vmatpush1.msra.mxu0 0.0
    %747 = vmatprep.subr.mxu0 0.0
    %748 = vmatpush1.msra.mxu0 0.0
    %749 = vmatprep.subr.mxu0 0.0
    %750 = vmatpush1.msra.mxu0 0.0
    %751 = vmatprep.subr.mxu0 0.0
    %752 = vmatpush1.msra.mxu0 0.0
    %753 = vmatprep.subr.mxu0 0.0
    %754 = vmatpush1.msra.mxu0 0.0
    %755 = vmatprep.subr.mxu0 0.0
    %756 = vmatpush1.msra.mxu0 0.0
    %757 = vmatprep.subr.mxu0 0.0
    %758 = vmatpush1.msra.mxu0 0.0
    %759 = vmatprep.subr.mxu0 0.0
    %760 = vmatpush1.msra.mxu0 0.0
    %761 = vmatprep.subr.mxu0 0.0
    %762 = vmatpush1.msra.mxu0 0.0
    %763 = vmatprep.subr.mxu0 0.0
    %764 = vmatpush1.msra.mxu0 0.0
    %765 = vmatprep.subr.mxu0 0.0
    %766 = vmatpush1.msra.mxu0 0.0
    %767 = vmatprep.subr.mxu0 0.0
    %768 = vmatpush1.msra.mxu0 0.0
    %769 = vmatprep.subr.mxu0 0.0
    %770 = vmatpush1.msra.mxu0 0.0
    %771 = vmatprep.subr.mxu0 0.0
    %772 = vmatpush1.msra.mxu0 0.0
    %773 = vmatprep.subr.mxu0 0.0
    %774 = vmatpush1.msra.mxu0 0.0
    %775 = vmatprep.subr.mxu0 0.0
    %776 = vmatpush1.msra.mxu0 0.0
    %777 = vmatprep.subr.mxu0 0.0
    %778 = vmatpush1.msra.mxu0 0.0
    %779 = vmatprep.subr.mxu0 0.0
    %780 = vmatpush1.msra.mxu0 0.0
    %781 = vmatprep.subr.mxu0 0.0
    %782 = vmatpush1.msra.mxu0 0.0
    %783 = vmatprep.mubr.f32.mxu0 0.0
    %784 = vmatmul.mubr.f32.gmra.mrb[0].mxu0 %v714
    %v785 = vpop.f32.mrb[0].mxu0
    %v786 = vadd.f32 0.0, %v785
    %v787 = vpop.f32.mrb[0].mxu0
    %788 = vmatprep.mubr.f32.mxu0 0.0
    %789 = vmatmul.mubr.f32.gmra.mrb[0].mxu0 %v717
    %v790 = vpop.f32.mrb[0].mxu0
    %v791 = vadd.f32 0.0, %v790
    %v792 = vpop.f32.mrb[0].mxu0
    %793 = vdwg.mxu0
    %794 = vrot.lane.b32.xlu0 %v175, 64
    %v795 = vpop.permute.xlu0 %794
    %796 = vrot.lane.b32.xlu0 %v177, 64
    %v797 = vpop.permute.xlu0 %796
    %v801 = vsel %vm531, %v616, 0
    %v804 = vsel %vm531, %v617, 0
    %806 = vmatprep.subr.mxu0 0.0
    %807 = vmatpush1.msra.mxu0 %v795
    %808 = vmatprep.subr.mxu0 0.0
    %809 = vmatpush1.msra.mxu0 %v797
    %810 = vmatprep.subr.mxu0 0.0
    %811 = vmatpush1.msra.mxu0 0.0
    %812 = vmatprep.subr.mxu0 0.0
    %813 = vmatpush1.msra.mxu0 0.0
    %814 = vmatprep.subr.mxu0 0.0
    %815 = vmatpush1.msra.mxu0 0.0
    %816 = vmatprep.subr.mxu0 0.0
    %817 = vmatpush1.msra.mxu0 0.0
    %818 = vmatprep.subr.mxu0 0.0
    %819 = vmatpush1.msra.mxu0 0.0
    %820 = vmatprep.subr.mxu0 0.0
    %821 = vmatpush1.msra.mxu0 0.0
    %822 = vmatprep.subr.mxu0 0.0
    %823 = vmatpush1.msra.mxu0 0.0
    %824 = vmatprep.subr.mxu0 0.0
    %825 = vmatpush1.msra.mxu0 0.0
    %826 = vmatprep.subr.mxu0 0.0
    %827 = vmatpush1.msra.mxu0 0.0
    %828 = vmatprep.subr.mxu0 0.0
    %829 = vmatpush1.msra.mxu0 0.0
    %830 = vmatprep.subr.mxu0 0.0
    %831 = vmatpush1.msra.mxu0 0.0
    %832 = vmatprep.subr.mxu0 0.0
    %833 = vmatpush1.msra.mxu0 0.0
    %834 = vmatprep.subr.mxu0 0.0
    %835 = vmatpush1.msra.mxu0 0.0
    %836 = vmatprep.subr.mxu0 0.0
    %837 = vmatpush1.msra.mxu0 0.0
    %838 = vmatprep.subr.mxu0 0.0
    %839 = vmatpush1.msra.mxu0 0.0
    %840 = vmatprep.subr.mxu0 0.0
    %841 = vmatpush1.msra.mxu0 0.0
    %842 = vmatprep.subr.mxu0 0.0
    %843 = vmatpush1.msra.mxu0 0.0
    %844 = vmatprep.subr.mxu0 0.0
    %845 = vmatpush1.msra.mxu0 0.0
    %846 = vmatprep.subr.mxu0 0.0
    %847 = vmatpush1.msra.mxu0 0.0
    %848 = vmatprep.subr.mxu0 0.0
    %849 = vmatpush1.msra.mxu0 0.0
    %850 = vmatprep.subr.mxu0 0.0
    %851 = vmatpush1.msra.mxu0 0.0
    %852 = vmatprep.subr.mxu0 0.0
    %853 = vmatpush1.msra.mxu0 0.0
    %854 = vmatprep.subr.mxu0 0.0
    %855 = vmatpush1.msra.mxu0 0.0
    %856 = vmatprep.subr.mxu0 0.0
    %857 = vmatpush1.msra.mxu0 0.0
    %858 = vmatprep.subr.mxu0 0.0
    %859 = vmatpush1.msra.mxu0 0.0
    %860 = vmatprep.subr.mxu0 0.0
    %861 = vmatpush1.msra.mxu0 0.0
    %862 = vmatprep.subr.mxu0 0.0
    %863 = vmatpush1.msra.mxu0 0.0
    %864 = vmatprep.subr.mxu0 0.0
    %865 = vmatpush1.msra.mxu0 0.0
    %866 = vmatprep.subr.mxu0 0.0
    %867 = vmatpush1.msra.mxu0 0.0
    %868 = vmatprep.subr.mxu0 0.0
    %869 = vmatpush1.msra.mxu0 0.0
    %870 = vmatprep.mubr.f32.mxu0 0.0
    %871 = vmatmul.mubr.f32.gmra.mrb[0].mxu0 %v801
    %v872 = vpop.f32.mrb[0].mxu0
    %v873 = vadd.f32 0.0, %v872
    %v874 = vpop.f32.mrb[0].mxu0
    %875 = vmatprep.mubr.f32.mxu0 0.0
    %876 = vmatmul.mubr.f32.gmra.mrb[0].mxu0 %v804
    %v877 = vpop.f32.mrb[0].mxu0
    %v878 = vadd.f32 0.0, %v877
    %v879 = vpop.f32.mrb[0].mxu0
    %880 = vdwg.mxu0
    %881 = vrot.lane.b32.xlu0 %v179, 64
    %v882 = vpop.permute.xlu0 %881
    %883 = vrot.lane.b32.xlu0 %v181, 64
    %v884 = vpop.permute.xlu0 %883
    %v888 = vsel %vm531, %v618, 0
    %v891 = vsel %vm531, %v619, 0
    %893 = vmatprep.subr.mxu0 0.0
    %894 = vmatpush1.msra.mxu0 %v882
    %895 = vmatprep.subr.mxu0 0.0
    %896 = vmatpush1.msra.mxu0 %v884
    %897 = vmatprep.subr.mxu0 0.0
    %898 = vmatpush1.msra.mxu0 0.0
    %899 = vmatprep.subr.mxu0 0.0
    %900 = vmatpush1.msra.mxu0 0.0
    %901 = vmatprep.subr.mxu0 0.0
    %902 = vmatpush1.msra.mxu0 0.0
    %903 = vmatprep.subr.mxu0 0.0
    %904 = vmatpush1.msra.mxu0 0.0
    %905 = vmatprep.subr.mxu0 0.0
    %906 = vmatpush1.msra.mxu0 0.0
    %907 = vmatprep.subr.mxu0 0.0
    %908 = vmatpush1.msra.mxu0 0.0
    %909 = vmatprep.subr.mxu0 0.0
    %910 = vmatpush1.msra.mxu0 0.0
    %911 = vmatprep.subr.mxu0 0.0
    %912 = vmatpush1.msra.mxu0 0.0
    %913 = vmatprep.subr.mxu0 0.0
    %914 = vmatpush1.msra.mxu0 0.0
    %915 = vmatprep.subr.mxu0 0.0
    %916 = vmatpush1.msra.mxu0 0.0
    %917 = vmatprep.subr.mxu0 0.0
    %918 = vmatpush1.msra.mxu0 0.0
    %919 = vmatprep.subr.mxu0 0.0
    %920 = vmatpush1.msra.mxu0 0.0
    %921 = vmatprep.subr.mxu0 0.0
    %922 = vmatpush1.msra.mxu0 0.0
    %923 = vmatprep.subr.mxu0 0.0
    %924 = vmatpush1.msra.mxu0 0.0
    %925 = vmatprep.subr.mxu0 0.0
    %926 = vmatpush1.msra.mxu0 0.0
    %927 = vmatprep.subr.mxu0 0.0
    %928 = vmatpush1.msra.mxu0 0.0
    %929 = vmatprep.subr.mxu0 0.0
    %930 = vmatpush1.msra.mxu0 0.0
    %931 = vmatprep.subr.mxu0 0.0
    %932 = vmatpush1.msra.mxu0 0.0
    %933 = vmatprep.subr.mxu0 0.0
    %934 = vmatpush1.msra.mxu0 0.0
    %935 = vmatprep.subr.mxu0 0.0
    %936 = vmatpush1.msra.mxu0 0.0
    %937 = vmatprep.subr.mxu0 0.0
    %938 = vmatpush1.msra.mxu0 0.0
    %939 = vmatprep.subr.mxu0 0.0
    %940 = vmatpush1.msra.mxu0 0.0
    %941 = vmatprep.subr.mxu0 0.0
    %942 = vmatpush1.msra.mxu0 0.0
    %943 = vmatprep.subr.mxu0 0.0
    %944 = vmatpush1.msra.mxu0 0.0
    %945 = vmatprep.subr.mxu0 0.0
    %946 = vmatpush1.msra.mxu0 0.0
    %947 = vmatprep.subr.mxu0 0.0
    %948 = vmatpush1.msra.mxu0 0.0
    %949 = vmatprep.subr.mxu0 0.0
    %950 = vmatpush1.msra.mxu0 0.0
    %951 = vmatprep.subr.mxu0 0.0
    %952 = vmatpush1.msra.mxu0 0.0
    %953 = vmatprep.subr.mxu0 0.0
    %954 = vmatpush1.msra.mxu0 0.0
    %955 = vmatprep.subr.mxu0 0.0
    %956 = vmatpush1.msra.mxu0 0.0
    %957 = vmatprep.mubr.f32.mxu0 0.0
    %958 = vmatmul.mubr.f32.gmra.mrb[0].mxu0 %v888
    %v959 = vpop.f32.mrb[0].mxu0
    %v960 = vadd.f32 0.0, %v959
    %v961 = vpop.f32.mrb[0].mxu0
    %962 = vmatprep.mubr.f32.mxu0 0.0
    %963 = vmatmul.mubr.f32.gmra.mrb[0].mxu0 %v891
    %v964 = vpop.f32.mrb[0].mxu0
    %v965 = vadd.f32 0.0, %v964
    %v966 = vpop.f32.mrb[0].mxu0
    %967 = vdwg.mxu0
    %970 = vrot.lane.b32.xlu0 %v786, 8
    %v971 = vpop.permute.xlu0 %970
    %972 = vrot.lane.b32.xlu0 %v791, 8
    %v973 = vpop.permute.xlu0 %972
    %978 = vrot.lane.b32.xlu0 %v873, 16
    %v979 = vpop.permute.xlu0 %978
    %980 = vrot.lane.b32.xlu0 %v878, 16
    %v981 = vpop.permute.xlu0 %980
    %986 = vrot.lane.b32.xlu0 %v960, 24
    %v987 = vpop.permute.xlu0 %986
    %988 = vrot.lane.b32.xlu0 %v965, 24
    %v989 = vpop.permute.xlu0 %988
    %v992 = vsel %vm186, %v699, %v971
    %v993 = vsel %vm186, %v704, %v973
    %v994 = vsel %vm531, %v992, %v979
    %v995 = vsel %vm531, %v993, %v981
    %vm996 = vcmask 195584
    %v997 = vsel %vm996, %v994, %v987
    %v998 = vsel %vm996, %v995, %v989
    %v999 = vld [vmem:[#allocation7] sm:$0xff]
    %v1000 = vld [vmem:[#allocation7 + $0x8] sm:$0xff]
    %v1001 = vld [vmem:[#allocation7 + $0x10] sm:$0xff]
    %v1002 = vld [vmem:[#allocation7 + $0x18] sm:$0xff]
    %v1003 = vlaneseq
    %v1004 = vshrl.u32 %v1003, 7
    %v1005 = vsub.s32 1, %v1004
    %v1006 = vrot.slane %v77, %v1005
    %v1008 = vsel %vm86, %v997, 0
    %v1011 = vsel %vm86, %v998, 0
    %1013 = vmatprep.subr.mxu0 0.0
    %1014 = vmatpush1.msra.mxu0 %v999
    %1015 = vmatprep.subr.mxu0 0.0
    %1016 = vmatpush1.msra.mxu0 %v1000
    %1017 = vmatprep.subr.mxu0 0.0
    %1018 = vmatpush1.msra.mxu0 %v1001
    %1019 = vmatprep.subr.mxu0 0.0
    %1020 = vmatpush1.msra.mxu0 %v1002
    %1021 = vmatprep.subr.mxu0 0.0
    %1022 = vmatpush1.msra.mxu0 0.0
    %1023 = vmatprep.subr.mxu0 0.0
    %1024 = vmatpush1.msra.mxu0 0.0
    %1025 = vmatprep.subr.mxu0 0.0
    %1026 = vmatpush1.msra.mxu0 0.0
    %1027 = vmatprep.subr.mxu0 0.0
    %1028 = vmatpush1.msra.mxu0 0.0
    %1029 = vmatprep.subr.mxu0 0.0
    %1030 = vmatpush1.msra.mxu0 0.0
    %1031 = vmatprep.subr.mxu0 0.0
    %1032 = vmatpush1.msra.mxu0 0.0
    %1033 = vmatprep.subr.mxu0 0.0
    %1034 = vmatpush1.msra.mxu0 0.0
    %1035 = vmatprep.subr.mxu0 0.0
    %1036 = vmatpush1.msra.mxu0 0.0
    %1037 = vmatprep.subr.mxu0 0.0
    %1038 = vmatpush1.msra.mxu0 0.0
    %1039 = vmatprep.subr.mxu0 0.0
    %1040 = vmatpush1.msra.mxu0 0.0
    %1041 = vmatprep.subr.mxu0 0.0
    %1042 = vmatpush1.msra.mxu0 0.0
    %1043 = vmatprep.subr.mxu0 0.0
    %1044 = vmatpush1.msra.mxu0 0.0
    %1045 = vmatprep.subr.mxu0 0.0
    %1046 = vmatpush1.msra.mxu0 0.0
    %1047 = vmatprep.subr.mxu0 0.0
    %1048 = vmatpush1.msra.mxu0 0.0
    %1049 = vmatprep.subr.mxu0 0.0
    %1050 = vmatpush1.msra.mxu0 0.0
    %1051 = vmatprep.subr.mxu0 0.0
    %1052 = vmatpush1.msra.mxu0 0.0
    %1053 = vmatprep.subr.mxu0 0.0
    %1054 = vmatpush1.msra.mxu0 0.0
    %1055 = vmatprep.subr.mxu0 0.0
    %1056 = vmatpush1.msra.mxu0 0.0
    %1057 = vmatprep.subr.mxu0 0.0
    %1058 = vmatpush1.msra.mxu0 0.0
    %1059 = vmatprep.subr.mxu0 0.0
    %1060 = vmatpush1.msra.mxu0 0.0
    %1061 = vmatprep.subr.mxu0 0.0
    %1062 = vmatpush1.msra.mxu0 0.0
    %1063 = vmatprep.subr.mxu0 0.0
    %1064 = vmatpush1.msra.mxu0 0.0
    %1065 = vmatprep.subr.mxu0 0.0
    %1066 = vmatpush1.msra.mxu0 0.0
    %1067 = vmatprep.subr.mxu0 0.0
    %1068 = vmatpush1.msra.mxu0 0.0
    %1069 = vmatprep.subr.mxu0 0.0
    %1070 = vmatpush1.msra.mxu0 0.0
    %1071 = vmatprep.subr.mxu0 0.0
    %1072 = vmatpush1.msra.mxu0 0.0
    %1073 = vmatprep.subr.mxu0 0.0
    %1074 = vmatpush1.msra.mxu0 0.0
    %1075 = vmatprep.subr.mxu0 0.0
    %1076 = vmatpush1.msra.mxu0 0.0
    %1077 = vmatprep.mubr.f32.mxu0 0.0
    %1078 = vmatmul.mubr.f32.gmra.mrb[0].mxu0 %v1008
    %v1079 = vpop.f32.mrb[0].mxu0
    %v1080 = vadd.f32 %v1006, %v1079
    %v1081 = vpop.f32.mrb[0].mxu0
    %1082 = vmatprep.mubr.f32.mxu0 0.0
    %1083 = vmatmul.mubr.f32.gmra.mrb[0].mxu0 %v1011
    %v1084 = vpop.f32.mrb[0].mxu0
    %v1085 = vadd.f32 %v1006, %v1084
    %v1086 = vpop.f32.mrb[0].mxu0
    %1087 = vdwg.mxu0
    %v1088 = vadd.f32 %v1080, %v73
    %v1089 = vadd.f32 %v1085, %v74
    %v1090 = vsel %vm86, %v1088, 0.0
    %1091 = vadd.xlane.f32.xlu0 %v1090
    %v1092 = vpop.xlane.xlu0 %1091
    %v1093 = vsel %vm86, %v1089, 0.0
    %1094 = vadd.xlane.f32.xlu0 %v1093
    %v1095 = vpop.xlane.xlu0 %1094
    %v1096 = vrcp.pop 32.0
    %v1097 = vmul.f32 %v1092, %v1096
    %v1098 = vmul.f32 %v1095, %v1096
    %v1099 = vsub.f32 %v1088, %v1097
    %v1100 = vsub.f32 %v1089, %v1098
    %v1101 = vmul.f32 %v1099, %v1099
    %v1102 = vmul.f32 %v1100, %v1100
    %v1103 = vsel %vm86, %v1101, 0.0
    %1104 = vadd.xlane.f32.xlu0 %v1103
    %v1105 = vpop.xlane.xlu0 %1104
    %v1106 = vsel %vm86, %v1102, 0.0
    %1107 = vadd.xlane.f32.xlu0 %v1106
    %v1108 = vpop.xlane.xlu0 %1107
    %v1109 = vmul.f32 %v1105, %v1096
    %v1110 = vmul.f32 %v1108, %v1096
    %v1111 = vadd.f32 %v1109, 1e-12
    %v1112 = vadd.f32 %v1110, 1e-12
    %v1113 = vrsqrt.pop %v1111
    %v1114 = vrsqrt.pop %v1112
    %v1115 = vmul.f32 %v1099, %v1113
    %v1116 = vmul.f32 %v1100, %v1114
    %v1117 = vlaneseq
    %v1118 = vshrl.u32 %v1117, 7
    %v1119 = vsub.s32 2, %v1118
    %v1120 = vrot.slane %v77, %v1119
    %v1121 = vmul.f32 %v1115, %v1120
    %v1122 = vmul.f32 %v1116, %v1120
    %v1123 = vlaneseq
    %v1124 = vshrl.u32 %v1123, 7
    %v1125 = vsub.s32 3, %v1124
    %v1126 = vrot.slane %v77, %v1125
    %v1127 = vadd.f32 %v1121, %v1126
    %v1128 = vadd.f32 %v1122, %v1126
    %1129 = vst.msk [vmem:[#allocation10] sm:$0xff] %vm86, %v1127
    %1130 = vst.msk [vmem:[#allocation10 + $0x8] sm:$0xff] %vm86, %v1128
    // Predicated region
    $region34: #{bert_attention.1} parent=1 // pred_check
      _
    $region35: #{bert_attention.1} parent=1 // pred_check_branch
      %1132 = sbr.rel (0) target = $region37
    $region36: #{bert_attention.1} parent=1 // pred_region
      %s1134 = ssub.s32 256, 256
      %1135 = vsyncadd [#allocation4], %s1134
      %s1136 = sshll.u32 [#allocation10], 4
      %s1137 = int_to_ptr.vmem [resolvable:$true] %s1136
      %1142 = dma.vmem_to_hbm [thread:$0]  %s1137, 256, %s4, [#allocation4], 128, 128, 8
    $region37: #{bert_attention.1} parent=1 // pred_fallthru
      _
    // Predicated region
    $region38: #{bert_attention.1} parent=1 // pred_check
      _
    $region39: #{bert_attention.1} parent=1 // pred_check_branch
      %1144 = sbr.rel (0) target = $region41
    $region40: #{bert_attention.1} parent=1 // pred_region
      %1145 = dma.done [#allocation4], 256
    $region41: #{bert_attention.1} parent=1 // pred_fallthru
      _
    %1146 = vsyncpa [#allocation3], 1
    %1147 = vsyncpa [#allocation6], 1
    %1148 = vsyncpa [#allocation9], 1
    %1149 = vsyncpa [#allocation4], 1

</llo_original>
